<compile_context>
chip_gen: v7x
topology: tpu7x:2x2x1
jax: 0.10.0
libtpu: 0.0.40
codegen_flags: <defaults>
</compile_context>

<pallas_src>
import functools

import jax
import jax.numpy as jnp
from jax.experimental import pallas as pl
from jax.experimental.pallas import tpu as pltpu


def _soft_dice_kernel(logits_ref, labels_ref, loss_ref, numer_acc, denor_acc,
                      *, p, smooth, hw, tl, need_mask):
    """One (TN, TL) tile: accumulate per-sample numer/denor partial sums."""
    k = pl.program_id(1)

    @pl.when(k == 0)
    def _init():
        numer_acc[...] = jnp.zeros_like(numer_acc)
        denor_acc[...] = jnp.zeros_like(denor_acc)

    logits = logits_ref[...].astype(jnp.float32)   # matches .float() in torch fwd
    labels = labels_ref[...].astype(jnp.float32)   # in-kernel cast (free on VPU)
    probs = jax.nn.sigmoid(logits)

    # Specialize probs ** p so the EUP only carries the sigmoid.
    if p == 1:
        probs_p = probs
    elif p == 2:
        probs_p = probs * probs
    elif p == 3:
        probs_p = probs * probs * probs
    else:
        probs_p = probs ** p                       # general (keep p a Python int)

    numer_t = probs * labels
    denor_t = probs_p + labels

    if need_mask:
        # Mask lanes beyond the true flattened-spatial extent (garbage reads in
        # the padded tail of the last block must not contribute to the sums).
        col = k * tl + jax.lax.broadcasted_iota(jnp.int32, numer_t.shape, 1)
        valid = col < hw
        numer_t = jnp.where(valid, numer_t, 0.0)
        denor_t = jnp.where(valid, denor_t, 0.0)

    # Per-tile reduction over the lane axis is mostly VPU (vreg adds across
    # lane groups) with a single cheap XLU intra-vreg reduce; accumulate into
    # the grid-persistent (TN, 1) scratch.
    numer_acc[...] += jnp.sum(numer_t, axis=1, keepdims=True)
    denor_acc[...] += jnp.sum(denor_t, axis=1, keepdims=True)

    @pl.when(k == pl.num_programs(1) - 1)
    def _finalize():
        numer = 2.0 * numer_acc[...] + smooth
        denor = denor_acc[...] + smooth
        loss_ref[...] = 1.0 - numer / denor        # (TN, 1) per-sample loss


def soft_dice_loss_v2(logits, labels, p=1, smooth=1.0, reduction="mean",
                      *, lane_tile=32768):
    """JAX/Pallas equivalent of SoftDiceLossV2(p, smooth, reduction).forward."""
    assert logits.shape == labels.shape and logits.ndim == 3, "expect (N, H, W)"
    N, H, W = logits.shape
    HW = H * W

    # Glue: flatten spatial dims. Labels stay in their native dtype.
    x = logits.reshape(N, HW)
    y = labels.reshape(N, HW)

    # Batch tile: must be a multiple of 8 or the full extent.
    if N % 8 == 0:
        TN = min(N, 8)
    else:
        TN = N

    # Lane tile: multiple of 128, capped so 2 inputs x 2 pipeline buffers of
    # (TN, TL) f32 stay at a few MiB (safe for v5e 16 MiB / v7x 32 MiB scoped
    # VMEM defaults) while keeping per-grid-step overhead amortized.
    TL = min(pl.cdiv(HW, 128) * 128, lane_tile)
    need_mask = (HW % TL) != 0

    grid = (pl.cdiv(N, TN), pl.cdiv(HW, TL))

    kernel = functools.partial(
        _soft_dice_kernel, p=p, smooth=float(smooth),
        hw=HW, tl=TL, need_mask=need_mask)

    in_bytes = (x.size * jnp.dtype(x.dtype).itemsize
                + y.size * jnp.dtype(y.dtype).itemsize)
    cost = pl.CostEstimate(
        flops=6 * N * HW,            # sigmoid arith + mul/add per element
        transcendentals=N * HW,      # one exp per element (sigmoid)
        bytes_accessed=in_bytes + N * 4,
    )

    per_sample = pl.pallas_call(
        kernel,
        out_shape=jax.ShapeDtypeStruct((N, 1), jnp.float32),
        grid_spec=pltpu.PrefetchScalarGridSpec(
            num_scalar_prefetch=0,
            grid=grid,
            in_specs=[
                pl.BlockSpec((TN, TL), lambda i, k: (i, k)),
                pl.BlockSpec((TN, TL), lambda i, k: (i, k)),
            ],
            # Same output block for all k -> accumulator-resident output.
            out_specs=pl.BlockSpec((TN, 1), lambda i, k: (i, 0)),
            scratch_shapes=[
                pltpu.VMEM((TN, 1), jnp.float32),   # numer accumulator
                pltpu.VMEM((TN, 1), jnp.float32),   # denor accumulator
            ],
        ),
        compiler_params=pltpu.CompilerParams(
            dimension_semantics=("parallel", "arbitrary"),
        ),
        cost_estimate=cost,
    )(x, y)

    loss = per_sample[:, 0]  # (N,)
    if reduction == "mean":
        return jnp.mean(loss)
    elif reduction == "sum":
        return jnp.sum(loss)
    return loss


def _reference(logits, labels, p=1, smooth=1.0, reduction="mean"):
    probs = jax.nn.sigmoid(logits.astype(jnp.float32))
    labels = labels.astype(jnp.float32)
    numer = 2.0 * jnp.sum(probs * labels, axis=(1, 2)) + smooth
    denor = jnp.sum(probs ** p + labels, axis=(1, 2)) + smooth
    loss = 1.0 - numer / denor
    if reduction == "mean":
        return jnp.mean(loss)
    elif reduction == "sum":
        return jnp.sum(loss)
    return loss


if __name__ == "__main__":
    key = jax.random.PRNGKey(0)
    k1, k2, k3, k4 = jax.random.split(key, 4)

    # Test 1: canonical small shape, p=1, mean reduction, single tile.
    N, H, W = 2, 16, 16
    logits1 = jax.random.normal(k1, (N, H, W), dtype=jnp.float32)
    labels1 = jax.random.bernoulli(k2, p=0.5, shape=(N, H, W)).astype(jnp.float32)
    out1 = jax.block_until_ready(
        soft_dice_loss_v2(logits1, labels1, p=1, smooth=1.0, reduction="mean"))
    ref1 = _reference(logits1, labels1, p=1, smooth=1.0, reduction="mean")
    assert jnp.allclose(out1, ref1, atol=1e-5, rtol=1e-5), (out1, ref1)

    # Test 2: ragged spatial extent (HW not a multiple of 128), multi-tile
    # reduction grid (small lane_tile to force >1 spatial tile + masking),
    # odd batch, p=2, sum reduction.
    N2, H2, W2 = 3, 33, 29
    logits2 = jax.random.normal(k3, (N2, H2, W2), dtype=jnp.float32)
    labels2 = jax.random.bernoulli(k4, p=0.3, shape=(N2, H2, W2)).astype(jnp.float32)
    out2 = jax.block_until_ready(
        soft_dice_loss_v2(logits2, labels2, p=2, smooth=1.0, reduction="sum",
                          lane_tile=256))
    ref2 = _reference(logits2, labels2, p=2, smooth=1.0, reduction="sum")
    assert jnp.allclose(out2, ref2, atol=1e-5, rtol=1e-5), (out2, ref2)

    print("KERNEL_OK")
</pallas_src>

<mosaic_0001>
module attributes {stable_mosaic.version = 11 : i64} {
  func.func @_soft_dice_kernel(%arg0: i32, %arg1: i32, %arg2: memref<2x256xf32, #tpu.memory_space<vmem>>, %arg3: memref<2x256xf32, #tpu.memory_space<vmem>>, %arg4: memref<2x1xf32, #tpu.memory_space<vmem>>, %arg5: memref<2x1xf32, #tpu.memory_space<vmem>>, %arg6: memref<2x1xf32, #tpu.memory_space<vmem>>) attributes {dimension_semantics = [#tpu.dimension_semantics<parallel>, #tpu.dimension_semantics<arbitrary>], iteration_bounds = array<i64: 1, 1>, scalar_prefetch = 0 : i64, scratch_operands = 2 : i64, tpu.core_type = #tpu.core_type<tc>, window_params = [{transform_indices = @transform_0, window_bounds = array<i64: 2, 256>}, {transform_indices = @transform_1, window_bounds = array<i64: 2, 256>}, {transform_indices = @transform_2, window_bounds = array<i64: 2, 1>}]} {
    %c0_i32 = arith.constant 0 : i32
    %0 = arith.cmpi eq, %arg1, %c0_i32 : i32
    %1 = arith.extui %0 : i1 to i32
    %c0_i32_0 = arith.constant 0 : i32
    %2 = arith.cmpi ne, %1, %c0_i32_0 : i32
    scf.if %2 {
      %cst_16 = arith.constant 0.000000e+00 : f32
      %25 = vector.broadcast %cst_16 : f32 to vector<2x1xf32>
      %c0_17 = arith.constant 0 : index
      %c0_18 = arith.constant 0 : index
      %26 = vector.load %arg5[%c0_17, %c0_18] : memref<2x1xf32, #tpu.memory_space<vmem>>, vector<2x1xf32>
      tpu.vector_store %arg5[%c0_17, %c0_18], %25 {strides = array<i32>} : memref<2x1xf32, #tpu.memory_space<vmem>>, vector<2x1xf32>,
      %cst_19 = arith.constant 0.000000e+00 : f32
      %27 = vector.broadcast %cst_19 : f32 to vector<2x1xf32>
      %c0_20 = arith.constant 0 : index
      %c0_21 = arith.constant 0 : index
      %28 = vector.load %arg6[%c0_20, %c0_21] : memref<2x1xf32, #tpu.memory_space<vmem>>, vector<2x1xf32>
      tpu.vector_store %arg6[%c0_20, %c0_21], %27 {strides = array<i32>} : memref<2x1xf32, #tpu.memory_space<vmem>>, vector<2x1xf32>,
    } else {
    }
    %c0 = arith.constant 0 : index
    %c0_1 = arith.constant 0 : index
    %3 = vector.load %arg2[%c0, %c0_1] : memref<2x256xf32, #tpu.memory_space<vmem>>, vector<2x256xf32>
    %c0_2 = arith.constant 0 : index
    %c0_3 = arith.constant 0 : index
    %4 = vector.load %arg3[%c0_2, %c0_3] : memref<2x256xf32, #tpu.memory_space<vmem>>, vector<2x256xf32>
    %5 = arith.negf %3 : vector<2x256xf32>
    %6 = math.exp %5 : vector<2x256xf32>
    %cst = arith.constant 1.000000e+00 : f32
    %7 = vector.broadcast %cst : f32 to vector<2x256xf32>
    %8 = arith.addf %7, %6 : vector<2x256xf32>
    %9 = arith.divf %7, %8 : vector<2x256xf32>
    %10 = arith.mulf %9, %4 : vector<2x256xf32>
    %11 = arith.addf %9, %4 : vector<2x256xf32>
    %c0_4 = arith.constant 0 : index
    %c0_5 = arith.constant 0 : index
    %12 = vector.load %arg5[%c0_4, %c0_5] : memref<2x1xf32, #tpu.memory_space<vmem>>, vector<2x1xf32>
    %cst_6 = arith.constant dense<0.000000e+00> : vector<2xf32>
    %13 = vector.multi_reduction <add>, %10, %cst_6 [1] : vector<2x256xf32> to vector<2xf32>
    %14 = vector.shape_cast %13 : vector<2xf32> to vector<2x1xf32>
    %15 = arith.addf %12, %14 : vector<2x1xf32>
    %c0_7 = arith.constant 0 : index
    %c0_8 = arith.constant 0 : index
    %16 = vector.load %arg5[%c0_7, %c0_8] : memref<2x1xf32, #tpu.memory_space<vmem>>, vector<2x1xf32>
    tpu.vector_store %arg5[%c0_7, %c0_8], %15 {strides = array<i32>} : memref<2x1xf32, #tpu.memory_space<vmem>>, vector<2x1xf32>,
    %c0_9 = arith.constant 0 : index
    %c0_10 = arith.constant 0 : index
    %17 = vector.load %arg6[%c0_9, %c0_10] : memref<2x1xf32, #tpu.memory_space<vmem>>, vector<2x1xf32>
    %cst_11 = arith.constant dense<0.000000e+00> : vector<2xf32>
    %18 = vector.multi_reduction <add>, %11, %cst_11 [1] : vector<2x256xf32> to vector<2xf32>
    %19 = vector.shape_cast %18 : vector<2xf32> to vector<2x1xf32>
    %20 = arith.addf %17, %19 : vector<2x1xf32>
    %c0_12 = arith.constant 0 : index
    %c0_13 = arith.constant 0 : index
    %21 = vector.load %arg6[%c0_12, %c0_13] : memref<2x1xf32, #tpu.memory_space<vmem>>, vector<2x1xf32>
    tpu.vector_store %arg6[%c0_12, %c0_13], %20 {strides = array<i32>} : memref<2x1xf32, #tpu.memory_space<vmem>>, vector<2x1xf32>,
    %c0_i32_14 = arith.constant 0 : i32
    %22 = arith.cmpi eq, %arg1, %c0_i32_14 : i32
    %23 = arith.extui %22 : i1 to i32
    %c0_i32_15 = arith.constant 0 : i32
    %24 = arith.cmpi ne, %23, %c0_i32_15 : i32
    scf.if %24 {
      %c0_16 = arith.constant 0 : index
      %c0_17 = arith.constant 0 : index
      %25 = vector.load %arg5[%c0_16, %c0_17] : memref<2x1xf32, #tpu.memory_space<vmem>>, vector<2x1xf32>
      %cst_18 = arith.constant 2.000000e+00 : f32
      %26 = vector.broadcast %cst_18 : f32 to vector<2x1xf32>
      %27 = arith.mulf %26, %25 : vector<2x1xf32>
      %cst_19 = arith.constant 1.000000e+00 : f32
      %28 = vector.broadcast %cst_19 : f32 to vector<2x1xf32>
      %29 = arith.addf %27, %28 : vector<2x1xf32>
      %c0_20 = arith.constant 0 : index
      %c0_21 = arith.constant 0 : index
      %30 = vector.load %arg6[%c0_20, %c0_21] : memref<2x1xf32, #tpu.memory_space<vmem>>, vector<2x1xf32>
      %cst_22 = arith.constant 1.000000e+00 : f32
      %31 = vector.broadcast %cst_22 : f32 to vector<2x1xf32>
      %32 = arith.addf %30, %31 : vector<2x1xf32>
      %33 = arith.divf %29, %32 : vector<2x1xf32>
      %cst_23 = arith.constant 1.000000e+00 : f32
      %34 = vector.broadcast %cst_23 : f32 to vector<2x1xf32>
      %35 = arith.subf %34, %33 : vector<2x1xf32>
      %c0_24 = arith.constant 0 : index
      %c0_25 = arith.constant 0 : index
      %36 = vector.load %arg4[%c0_24, %c0_25] : memref<2x1xf32, #tpu.memory_space<vmem>>, vector<2x1xf32>
      tpu.vector_store %arg4[%c0_24, %c0_25], %35 {strides = array<i32>} : memref<2x1xf32, #tpu.memory_space<vmem>>, vector<2x1xf32>,
    } else {
    }
    return
  }
  func.func @transform_0(%arg0: i32, %arg1: i32) -> (i32, i32) {
    %c0_i32 = arith.constant 0 : i32
    return %arg0, %arg1 : i32, i32
  }
  func.func @transform_1(%arg0: i32, %arg1: i32) -> (i32, i32) {
    %c0_i32 = arith.constant 0 : i32
    return %arg0, %arg1 : i32, i32
  }
  func.func @transform_2(%arg0: i32, %arg1: i32) -> (i32, i32) {
    %c0_i32 = arith.constant 0 : i32
    %c0_i32_0 = arith.constant 0 : i32
    return %arg0, %c0_i32 : i32, i32
  }
}

</mosaic_0001>

<llo_original>
// kernel: tpu_custom_call.1
$region0: #{tpu_custom_call.1}
  #allocation0 [shape = 'u32[]', space=smem, size = 0x4, offset = 0x4, fixed_abs, tag = 'smem constant byte address 0x4 - core index']
  #allocation1 [shape = 'u32[144,128]{1,0:T(1,128)}', space=vmem, size = 0x12000, scoped, tag = 'internal scratch']
  #allocation2 [shape = 'f32[2,1]{1,0:T(2,128)}', space=vmem, size = 0x400, scoped, tag = 'scratch operand']
  #allocation3 [shape = 'f32[2,1]{1,0:T(2,128)}', space=vmem, size = 0x400, scoped, tag = 'scratch operand']
  %s0 = inlined_call_operand.hbm [shape: f32[2,256], index: 0, kind: input, shape index: {}]
  %s1 = inlined_call_operand.hbm [shape: f32[2,256], index: 1, kind: input, shape index: {}]
  %s2 = inlined_call_operand.vmem [shape: f32[2,1], index: 2, kind: output, shape index: {}]
  %s3 = sld [smem:[#allocation0]]
  $region34: #{tpu_custom_call.1} parent=0
    _
  %s5 = ssub.s32 1, %s3
  %s6 = scalar_select 0, %s5, %s3
  $region1: #{tpu_custom_call.1} parent=0
    #allocation4 [shape = 'u8[2048]{0}', space=vmem, size = 0x800, scoped, tag = 'input window, operand 0, single buffered']
    #allocation5 [shape = 's32[1]{0}', space=sflag, size = 0x4, scoped, tag = 'scoped memory for tpu_custom_call.1']
    #allocation6 [shape = 'u8[2048]{0}', space=vmem, size = 0x800, scoped, tag = 'input window, operand 1, single buffered']
    #allocation7 [shape = 's32[1]{0}', space=sflag, size = 0x4, scoped, tag = 'scoped memory for tpu_custom_call.1']
    %7 = vsyncpa [#allocation5], 0
    %8 = vsyncpa [#allocation7], 0
    // Predicated region
    $region2: #{tpu_custom_call.1} parent=1 // pred_check
      _
    $region3: #{tpu_custom_call.1} parent=1 // pred_check_branch
      %10 = sbr.rel (0) target = $region5
    $region4: #{tpu_custom_call.1} parent=1 // pred_region
      %s12 = ssub.s32 64, 64
      %13 = vsyncadd [#allocation5], %s12
      %s15 = sshll.u32 [#allocation4], 4
      %s16 = int_to_ptr.vmem [resolvable:$true] %s15
      %18 = dma.hbm_to_vmem [thread:$0]  %s0, 64, %s16, [#allocation5]
    $region5: #{tpu_custom_call.1} parent=1 // pred_fallthru
      _
    // Predicated region
    $region6: #{tpu_custom_call.1} parent=1 // pred_check
      _
    $region7: #{tpu_custom_call.1} parent=1 // pred_check_branch
      %20 = sbr.rel (0) target = $region9
    $region8: #{tpu_custom_call.1} parent=1 // pred_region
      %s22 = ssub.s32 64, 64
      %23 = vsyncadd [#allocation7], %s22
      %s25 = sshll.u32 [#allocation6], 4
      %s26 = int_to_ptr.vmem [resolvable:$true] %s25
      %28 = dma.hbm_to_vmem [thread:$0]  %s1, 64, %s26, [#allocation7]
    $region9: #{tpu_custom_call.1} parent=1 // pred_fallthru
      _
    // Predicated region
    $region10: #{tpu_custom_call.1} parent=1 // pred_check
      _
    $region11: #{tpu_custom_call.1} parent=1 // pred_check_branch
      %30 = sbr.rel (0) target = $region13
    $region12: #{tpu_custom_call.1} parent=1 // pred_region
      %31 = dma.done [#allocation5], 64
    $region13: #{tpu_custom_call.1} parent=1 // pred_fallthru
      _
    // Predicated region
    $region14: #{tpu_custom_call.1} parent=1 // pred_check
      _
    $region15: #{tpu_custom_call.1} parent=1 // pred_check_branch
      %33 = sbr.rel (0) target = $region17
    $region16: #{tpu_custom_call.1} parent=1 // pred_region
      %34 = dma.done [#allocation7], 64
    $region17: #{tpu_custom_call.1} parent=1 // pred_fallthru
      _
    %p35 = scmp.eq.s32.totalorder 0, 0
    // Predicated region
    $region18: #{tpu_custom_call.1} parent=1 // pred_check
      %p36 = pneg %p35
    $region19: #{tpu_custom_call.1} parent=1 // pred_check_branch
      %38 = sbr.rel (%p36) target = $region21
    $region20: #{tpu_custom_call.1} parent=1 // pred_region
      %vm39 = vcmask 1024
      %40 = vst.msk [vmem:[#allocation2] sm:$0x3] %vm39, 0.0
      %41 = vst.msk [vmem:[#allocation3] sm:$0x3] %vm39, 0.0
    $region21: #{tpu_custom_call.1} parent=1 // pred_fallthru
      _
    %v42 = vld [vmem:[#allocation4] sm:$0xf]
    %v43 = vld [vmem:[#allocation6] sm:$0xf]
    %v44 = vxor.u32 %v42, 2147483648
    %v45 = vmul.f32 %v44, 1.442695
    %v46 = vpow.pop %v45
    %v47 = vadd.f32 %v46, 1.0
    %v48 = vrcp.pop %v47
    %v49 = vmul.f32 1.0, %v48
    %v50 = vmul.f32 %v49, %v43
    %v51 = vadd.f32 %v49, %v43
    %v52 = vld [vmem:[#allocation2] sm:$0x3]
    %v55 = vunpack.c.l.s4 1983009808
    %v56 = vunpack.c.0.s8 %v55
    %v57 = vlaneseq
    %v58 = vshrl.u32 %v57, 7
    %v59 = vsub.s32 %v56, %v58
    %v60 = vrot.slane %v50, %v59
    %v61 = vcombine.high %v60, %v60
    %vm64 = vcmask 1041408
    %v65 = vsel %vm64, %v60, 0.0
    %v66 = vsel %vm64, %v61, 0.0
    %v67 = vadd.f32 %v65, %v66
    %68 = vadd.xlane.f32.xlu0 %v67
    %v69 = vpop.xlane.xlu0 %68
    %v70 = vadd.f32 %v52, %v69
    %vm71 = vcmask 1024
    %72 = vst.msk [vmem:[#allocation2] sm:$0x3] %vm71, %v70
    %v73 = vld [vmem:[#allocation3] sm:$0x3]
    %v76 = vunpack.c.l.s4 1983009808
    %v77 = vunpack.c.0.s8 %v76
    %v78 = vlaneseq
    %v79 = vshrl.u32 %v78, 7
    %v80 = vsub.s32 %v77, %v79
    %v81 = vrot.slane %v51, %v80
    %v82 = vcombine.high %v81, %v81
    %v85 = vsel %vm64, %v81, 0.0
    %v86 = vsel %vm64, %v82, 0.0
    %v87 = vadd.f32 %v85, %v86
    %88 = vadd.xlane.f32.xlu0 %v87
    %v89 = vpop.xlane.xlu0 %88
    %v90 = vadd.f32 %v73, %v89
    %91 = vst.msk [vmem:[#allocation3] sm:$0x3] %vm71, %v90
    // Predicated region
    $region22: #{tpu_custom_call.1} parent=1 // pred_check
      %p92 = pneg %p35
    $region23: #{tpu_custom_call.1} parent=1 // pred_check_branch
      %94 = sbr.rel (%p92) target = $region25
    $region24: #{tpu_custom_call.1} parent=1 // pred_region
      %v95 = vld [vmem:[#allocation2] sm:$0x3]
      %v96 = vmul.f32 %v95, 2.0
      %v97 = vadd.f32 %v96, 1.0
      %v98 = vld [vmem:[#allocation3] sm:$0x3]
      %v99 = vadd.f32 %v98, 1.0
      %v100 = vrcp.pop %v99
      %v101 = vmul.f32 %v97, %v100
      %v102 = vsub.f32 1.0, %v101
      %103 = vst.msk [vmem:[%s2] sm:$0x3] %vm71, %v102
    $region25: #{tpu_custom_call.1} parent=1 // pred_fallthru
      _
    // Predicated region
    $region26: #{tpu_custom_call.1} parent=1 // pred_check
      _
    $region27: #{tpu_custom_call.1} parent=1 // pred_check_branch
      %105 = sbr.rel (0) target = $region29
    $region28: #{tpu_custom_call.1} parent=1 // pred_region
      _
    $region29: #{tpu_custom_call.1} parent=1 // pred_fallthru
      _
    // Predicated region
    $region30: #{tpu_custom_call.1} parent=1 // pred_check
      _
    $region31: #{tpu_custom_call.1} parent=1 // pred_check_branch
      %107 = sbr.rel (0) target = $region33
    $region32: #{tpu_custom_call.1} parent=1 // pred_region
      _
    $region33: #{tpu_custom_call.1} parent=1 // pred_fallthru
      _
    %108 = vsyncpa [#allocation5], 1
    %109 = vsyncpa [#allocation7], 1

</llo_original>
